<compile_context>
chip_gen: v6e
topology: v6e:2x2x1
jax: 0.10.0
libtpu: 0.0.40
codegen_flags: <defaults>
</compile_context>

<pallas_src>
import functools
import math

import jax
import jax.numpy as jnp
from jax.experimental import pallas as pl
from jax.experimental.pallas import tpu as pltpu


def _round_up(x, m):
    return (x + m - 1) // m * m


def _graphsage_kernel(adj_ref, xagg_ref, xself_ref, w1_ref, w2_ref, out_ref,
                      acc_ref, *, infeat):
    """One (row-tile i, reduction-tile k) grid step.

    acc_ref accumulates adj_tile @ [x | 1 | 0pad] over the k axis; the ones
    column puts the fused row degree in lane `infeat`.
    """
    k = pl.program_id(1)

    @pl.when(k == 0)
    def _():
        acc_ref[...] = jnp.zeros_like(acc_ref)

    # MXU: (tm, tk) @ (tk, Faug), bf16 operands, f32 accumulation.
    acc_ref[...] += jnp.dot(adj_ref[...], xagg_ref[...],
                            preferred_element_type=jnp.float32)

    @pl.when(k == pl.num_programs(1) - 1)
    def _():
        acc = acc_ref[...]                       # (tm, Faug) f32, lane-dense
        deg = acc[:, infeat:infeat + 1]          # (tm, 1) fused row degree
        inv = pl.reciprocal(deg, approx=True)    # EUP reciprocal (free slot)
        # Scale ALL lanes; the degree / padding lanes annihilate against the
        # zero rows of w2, so no lane slice of the accumulator is needed.
        h1 = acc * inv
        # cat([x, h1], 1) @ W == x @ W[:infeat] + h1 @ W[infeat:]
        out = jnp.dot(xself_ref[...], w1_ref[...],
                      preferred_element_type=jnp.float32)
        out += jnp.dot(h1, w2_ref[...], preferred_element_type=jnp.float32)
        out_ref[...] = out.astype(out_ref.dtype)


def graphsage_forward(x, adj, W, *, block_m=512, block_k=1024,
                      agg_dtype=jnp.bfloat16):
    """GraphSAGE forward. x: (N, infeat), adj: (N, N), W: (2*infeat, outfeat).

    block_m / block_k are row / reduction tile sizes over the node dim and are
    clamped so they divide the 128-aligned node count.  agg_dtype is the
    streaming dtype for adj and the augmented x (the O(N^2) traffic); bf16 is
    exact for 0/1 adjacency and the degree sums exactly in f32.  Callers that
    reuse the same adjacency across layers should pre-cast it to agg_dtype.
    """
    N, infeat = x.shape
    outfeat = W.shape[1]
    assert adj.shape == (N, N)
    assert W.shape[0] == 2 * infeat

    # ---- tile selection --------------------------------------------------
    Np = _round_up(N, 128)
    tk = max(128, min(block_k, Np))
    while Np % tk:                      # lane dim of adj tile: multiple of 128
        tk -= 128
    tm = max(8, min(block_m, Np))
    tm -= tm % 8
    while Np % tm:                      # sublane dim: multiple of 8
        tm -= 8
    # Give v7x's two TensorCores at least two row tiles when possible.
    if Np // tm < 2 and tm >= 256 and tm % 16 == 0:
        tm //= 2

    # Lane-dense widths: augmented/accumulator features and the output.
    Faug = _round_up(infeat + 1, 128)
    Fp = _round_up(outfeat, 128)

    # ---- operand staging (pad only when needed) ---------------------------
    # Padded adj rows/cols are zero: padded nodes contribute nothing, and the
    # padded (degree-0) output rows are sliced off below.
    if Np != N:
        adj_p = jnp.zeros((Np, Np), adj.dtype).at[:N, :N].set(adj)
        x_self = jnp.zeros((Np, infeat), x.dtype).at[:N, :].set(x)
    else:
        adj_p, x_self = adj, x
    adj_p = adj_p.astype(agg_dtype)

    # Augmented aggregation operand: [x | 1 | 0...0] so adj @ x_aug gives
    # [adj@x | deg | 0...0] in one MXU pass.
    x_aug = (jnp.zeros((Np, Faug), agg_dtype)
             .at[:N, :infeat].set(x.astype(agg_dtype))
             .at[:, infeat].set(1))

    # W split + zero-padded in the wrapper (no in-kernel sublane slicing).
    # w2's degree/pad rows are zero so the scaled accumulator's junk lanes
    # annihilate on the MXU.
    W = W.astype(jnp.float32)
    W1 = jnp.zeros((infeat, Fp), jnp.float32).at[:, :outfeat].set(W[:infeat])
    W2 = jnp.zeros((Faug, Fp), jnp.float32).at[:infeat, :outfeat].set(W[infeat:])

    kernel = functools.partial(_graphsage_kernel, infeat=infeat)

    cost = pl.CostEstimate(
        flops=2 * Np * Np * Faug + 2 * Np * (infeat + Faug) * Fp,
        transcendentals=Np,
        bytes_accessed=(Np * Np * adj_p.dtype.itemsize
                        + Np * Faug * x_aug.dtype.itemsize
                        + Np * infeat * x_self.dtype.itemsize
                        + (infeat + Faug) * Fp * 4
                        + Np * Fp * 4),
    )

    out_p = pl.pallas_call(
        kernel,
        out_shape=jax.ShapeDtypeStruct((Np, Fp), jnp.float32),
        grid_spec=pltpu.PrefetchScalarGridSpec(
            num_scalar_prefetch=0,
            grid=(Np // tm, Np // tk),
            in_specs=[
                pl.BlockSpec((tm, tk), lambda i, k: (i, k)),      # adj tile
                pl.BlockSpec((tk, Faug), lambda i, k: (k, 0)),    # [x | 1 | 0]
                pl.BlockSpec((tm, infeat), lambda i, k: (i, 0)),  # x (self)
                pl.BlockSpec((infeat, Fp), lambda i, k: (0, 0)),  # W[:infeat]
                pl.BlockSpec((Faug, Fp), lambda i, k: (0, 0)),    # W[infeat:], 0-padded
            ],
            out_specs=pl.BlockSpec((tm, Fp), lambda i, k: (i, 0)),
            scratch_shapes=[pltpu.VMEM((tm, Faug), jnp.float32)],
        ),
        compiler_params=pltpu.CompilerParams(
            dimension_semantics=("parallel", "arbitrary"),
        ),
        cost_estimate=cost,
    )(adj_p, x_aug, x_self, W1, W2)

    return out_p[:N, :outfeat]


def reference_forward(x, adj, W):
    h1 = adj @ x
    deg = adj.sum(axis=1, keepdims=True)
    h1 = h1 / deg
    h1 = jnp.concatenate([x, h1], axis=1)
    return h1 @ W


if __name__ == "__main__":
    key = jax.random.PRNGKey(0)
    k_x, k_adj, k_w, k_b = jax.random.split(key, 4)

    N = 256          # number of nodes
    infeat = 64
    outfeat = 64

    x = jax.random.normal(k_x, (N, infeat), dtype=jnp.float32)
    # Binary adjacency with self-loops so every row degree > 0 (the PyTorch
    # module divides by the degree without clamping, mirrored here).
    adj = (jax.random.uniform(k_adj, (N, N)) > 0.5).astype(jnp.float32)
    adj = jnp.maximum(adj, jnp.eye(N, dtype=jnp.float32))

    # Parameter init mirroring reset_parameters(): U(-stdv, stdv), stdv=1/sqrt(outfeat).
    stdv = 1.0 / math.sqrt(outfeat)
    W = jax.random.uniform(k_w, (2 * infeat, outfeat), minval=-stdv,
                           maxval=stdv, dtype=jnp.float32)
    # bias exists on the module but is unused in forward; kept for parity only.
    bias = jax.random.uniform(k_b, (outfeat,), minval=-stdv, maxval=stdv,
                              dtype=jnp.float32)

    out = graphsage_forward(x, adj, W)
    out = jax.block_until_ready(out)

    ref = reference_forward(x, adj, W)
    assert out.shape == (N, outfeat)
    max_err = float(jnp.max(jnp.abs(out - ref)))
    assert jnp.allclose(out, ref, atol=5e-3, rtol=5e-3), max_err

    print("KERNEL_OK")
</pallas_src>

<mosaic_0001>
module attributes {stable_mosaic.version = 11 : i64} {
  func.func @_graphsage_kernel(%arg0: i32, %arg1: i32, %arg2: memref<128x256xbf16, #tpu.memory_space<vmem>>, %arg3: memref<256x128xbf16, #tpu.memory_space<vmem>>, %arg4: memref<128x64xf32, #tpu.memory_space<vmem>>, %arg5: memref<64x128xf32, #tpu.memory_space<vmem>>, %arg6: memref<128x128xf32, #tpu.memory_space<vmem>>, %arg7: memref<128x128xf32, #tpu.memory_space<vmem>>, %arg8: memref<128x128xf32, #tpu.memory_space<vmem>>) attributes {dimension_semantics = [#tpu.dimension_semantics<parallel>, #tpu.dimension_semantics<arbitrary>], iteration_bounds = array<i64: 2, 1>, scalar_prefetch = 0 : i64, scratch_operands = 1 : i64, tpu.core_type = #tpu.core_type<tc>, window_params = [{transform_indices = @transform_0, window_bounds = array<i64: 128, 256>}, {transform_indices = @transform_1, window_bounds = array<i64: 256, 128>}, {transform_indices = @transform_2, window_bounds = array<i64: 128, 64>}, {pipeline_mode = #tpu.pipeline_mode<synchronous>, transform_indices = @transform_3, window_bounds = array<i64: 64, 128>}, {pipeline_mode = #tpu.pipeline_mode<synchronous>, transform_indices = @transform_4, window_bounds = array<i64: 128, 128>}, {transform_indices = @transform_5, window_bounds = array<i64: 128, 128>}]} {
    %c0_i32 = arith.constant 0 : i32
    %0 = arith.cmpi eq, %arg1, %c0_i32 : i32
    %1 = arith.extui %0 : i1 to i32
    %c0_i32_0 = arith.constant 0 : i32
    %2 = arith.cmpi ne, %1, %c0_i32_0 : i32
    scf.if %2 {
      %cst_10 = arith.constant 0.000000e+00 : f32
      %12 = vector.broadcast %cst_10 : f32 to vector<128x128xf32>
      %c0_11 = arith.constant 0 : index
      %c0_12 = arith.constant 0 : index
      %13 = vector.load %arg8[%c0_11, %c0_12] : memref<128x128xf32, #tpu.memory_space<vmem>>, vector<128x128xf32>
      tpu.vector_store %arg8[%c0_11, %c0_12], %12 {strides = array<i32>} : memref<128x128xf32, #tpu.memory_space<vmem>>, vector<128x128xf32>,
    } else {
    }
    %c0 = arith.constant 0 : index
    %c0_1 = arith.constant 0 : index
    %3 = vector.load %arg8[%c0, %c0_1] : memref<128x128xf32, #tpu.memory_space<vmem>>, vector<128x128xf32>
    %c0_2 = arith.constant 0 : index
    %c0_3 = arith.constant 0 : index
    %4 = vector.load %arg2[%c0_2, %c0_3] : memref<128x256xbf16, #tpu.memory_space<vmem>>, vector<128x256xbf16>
    %c0_4 = arith.constant 0 : index
    %c0_5 = arith.constant 0 : index
    %5 = vector.load %arg3[%c0_4, %c0_5] : memref<256x128xbf16, #tpu.memory_space<vmem>>, vector<256x128xbf16>
    %cst = arith.constant dense<0.000000e+00> : vector<128x128xf32>
    %6 = tpu.matmul %4, %5, %cst {dimension_numbers = #tpu.dot_dimension_numbers<[1], [0], [0], [1], [0, 0, 1, 1], [], []>} : vector<128x256xbf16>, vector<256x128xbf16>, vector<128x128xf32> -> vector<128x128xf32>
    %7 = arith.addf %3, %6 : vector<128x128xf32>
    %c0_6 = arith.constant 0 : index
    %c0_7 = arith.constant 0 : index
    %8 = vector.load %arg8[%c0_6, %c0_7] : memref<128x128xf32, #tpu.memory_space<vmem>>, vector<128x128xf32>
    tpu.vector_store %arg8[%c0_6, %c0_7], %7 {strides = array<i32>} : memref<128x128xf32, #tpu.memory_space<vmem>>, vector<128x128xf32>,
    %c0_i32_8 = arith.constant 0 : i32
    %9 = arith.cmpi eq, %arg1, %c0_i32_8 : i32
    %10 = arith.extui %9 : i1 to i32
    %c0_i32_9 = arith.constant 0 : i32
    %11 = arith.cmpi ne, %10, %c0_i32_9 : i32
    scf.if %11 {
      %c0_10 = arith.constant 0 : index
      %c0_11 = arith.constant 0 : index
      %12 = vector.load %arg8[%c0_10, %c0_11] : memref<128x128xf32, #tpu.memory_space<vmem>>, vector<128x128xf32>
      %13 = vector.extract_strided_slice %12 {offsets = [0, 64], sizes = [128, 1], strides = [1, 1]} : vector<128x128xf32> to vector<128x1xf32>
      %14 = tpu.reciprocal %13 {approx = true} : vector<128x1xf32> -> vector<128x1xf32>
      %15 = vector.broadcast %14 : vector<128x1xf32> to vector<128x128xf32>
      %16 = arith.mulf %12, %15 : vector<128x128xf32>
      %c0_12 = arith.constant 0 : index
      %c0_13 = arith.constant 0 : index
      %17 = vector.load %arg4[%c0_12, %c0_13] : memref<128x64xf32, #tpu.memory_space<vmem>>, vector<128x64xf32>
      %c0_14 = arith.constant 0 : index
      %c0_15 = arith.constant 0 : index
      %18 = vector.load %arg5[%c0_14, %c0_15] : memref<64x128xf32, #tpu.memory_space<vmem>>, vector<64x128xf32>
      %cst_16 = arith.constant dense<0.000000e+00> : vector<128x128xf32>
      %19 = tpu.matmul %17, %18, %cst_16 {dimension_numbers = #tpu.dot_dimension_numbers<[1], [0], [0], [1], [0, 0, 1, 1], [], []>} : vector<128x64xf32>, vector<64x128xf32>, vector<128x128xf32> -> vector<128x128xf32>
      %c0_17 = arith.constant 0 : index
      %c0_18 = arith.constant 0 : index
      %20 = vector.load %arg6[%c0_17, %c0_18] : memref<128x128xf32, #tpu.memory_space<vmem>>, vector<128x128xf32>
      %cst_19 = arith.constant dense<0.000000e+00> : vector<128x128xf32>
      %21 = tpu.matmul %16, %20, %cst_19 {dimension_numbers = #tpu.dot_dimension_numbers<[1], [0], [0], [1], [0, 0, 1, 1], [], []>} : vector<128x128xf32>, vector<128x128xf32>, vector<128x128xf32> -> vector<128x128xf32>
      %22 = arith.addf %19, %21 : vector<128x128xf32>
      %c0_20 = arith.constant 0 : index
      %c0_21 = arith.constant 0 : index
      %23 = vector.load %arg7[%c0_20, %c0_21] : memref<128x128xf32, #tpu.memory_space<vmem>>, vector<128x128xf32>
      tpu.vector_store %arg7[%c0_20, %c0_21], %22 {strides = array<i32>} : memref<128x128xf32, #tpu.memory_space<vmem>>, vector<128x128xf32>,
    } else {
    }
    return
  }
  func.func @transform_0(%arg0: i32, %arg1: i32) -> (i32, i32) {
    %c0_i32 = arith.constant 0 : i32
    return %arg0, %arg1 : i32, i32
  }
  func.func @transform_1(%arg0: i32, %arg1: i32) -> (i32, i32) {
    %c0_i32 = arith.constant 0 : i32
    %c0_i32_0 = arith.constant 0 : i32
    return %arg1, %c0_i32 : i32, i32
  }
  func.func @transform_2(%arg0: i32, %arg1: i32) -> (i32, i32) {
    %c0_i32 = arith.constant 0 : i32
    %c0_i32_0 = arith.constant 0 : i32
    return %arg0, %c0_i32 : i32, i32
  }
  func.func @transform_3(%arg0: i32, %arg1: i32) -> (i32, i32) {
    %c0_i32 = arith.constant 0 : i32
    %c0_i32_0 = arith.constant 0 : i32
    %c0_i32_1 = arith.constant 0 : i32
    return %c0_i32, %c0_i32_0 : i32, i32
  }
  func.func @transform_4(%arg0: i32, %arg1: i32) -> (i32, i32) {
    %c0_i32 = arith.constant 0 : i32
    %c0_i32_0 = arith.constant 0 : i32
    %c0_i32_1 = arith.constant 0 : i32
    return %c0_i32, %c0_i32_0 : i32, i32
  }
  func.func @transform_5(%arg0: i32, %arg1: i32) -> (i32, i32) {
    %c0_i32 = arith.constant 0 : i32
    %c0_i32_0 = arith.constant 0 : i32
    return %arg0, %c0_i32 : i32, i32
  }
}

</mosaic_0001>

<llo_original>
// kernel: tpu_custom_call.1
$region0: #{tpu_custom_call.1}
  #allocation0 [shape = 'u32[]', space=smem, size = 0x4, offset = 0x4, fixed_abs, tag = 'smem constant byte address 0x4 - core index']
  #allocation1 [shape = 'u32[144,128]{1,0:T(1,128)}', space=vmem, size = 0x12000, scoped, tag = 'internal scratch']
  #allocation2 [shape = 'f32[128,128]{1,0:T(8,128)}', space=vmem, size = 0x10000, scoped, tag = 'scratch operand']
  %s0 = inlined_call_operand.vmem [shape: bf16[256,256], index: 0, kind: input, shape index: {}]
  %s1 = inlined_call_operand.vmem [shape: bf16[256,128], index: 1, kind: input, shape index: {}]
  %s2 = inlined_call_operand.vmem [shape: f32[256,64], index: 2, kind: input, shape index: {}]
  %s3 = inlined_call_operand.hbm [shape: f32[64,128], index: 3, kind: input, shape index: {}]
  %s4 = inlined_call_operand.hbm [shape: f32[128,128], index: 4, kind: input, shape index: {}]
  %s5 = inlined_call_operand.hbm [shape: f32[256,128], index: 5, kind: output, shape index: {}]
  %s6 = sld [smem:[#allocation0]]
  $region69: #{tpu_custom_call.1} parent=0
    _
  %s8 = ssub.s32 1, %s6
  %s9 = scalar_select 0, %s8, %s6
  $region1: #{tpu_custom_call.1} parent=0
    #allocation3 [shape = 'u8[32768]{0}', space=vmem, size = 0x8000, scoped, tag = 'input window, operand 3, single buffered']
    #allocation4 [shape = 's32[2]{0}', space=sflag, size = 0x8, scoped, tag = 'scoped memory for tpu_custom_call.1']
    #allocation5 [shape = 's32[2]{0}', space=sflag, size = 0x8, scoped, tag = 'scoped memory for tpu_custom_call.1']
    #allocation6 [shape = 'u8[65536]{0}', space=vmem, size = 0x10000, scoped, tag = 'input window, operand 4, single buffered']
    #allocation7 [shape = 's32[1]{0}', space=sflag, size = 0x4, scoped, tag = 'scoped memory for tpu_custom_call.1']
    #allocation8 [shape = 'u8[131072]{0}', space=vmem, size = 0x20000, scoped, tag = 'output window, operand 0']
    %10 = vsyncpa [#allocation4], 0
    %11 = vsyncpa [#allocation7], 0
    %12 = vsyncpa [#allocation5], 0
    %s13 = scalar_lea.sflag [#allocation5], 1
    %14 = vsyncpa %s13, 0
    loop: start=0, step=1, limit=4
    $region2: #{tpu_custom_call.1} parent=1 // loop_pre_header
      _
    $region3: #{tpu_custom_call.1} parent=1 // loop_header
      %s16 = sphi 0, %s20
      %p17 = scmp.ge.s32.totalorder %s16, 4
      %s23 = sphi 0, %s35
      %s24 = sphi 0, %s31
      %s25 = sphi 0, %s23
      %s26 = sphi 0, %s24
      %s27 = sphi 0, %s25
      %s28 = sphi 0, %s26
      %s40 = sphi 0, %s42
      %s43 = sphi 0, %s40
      %s44 = sphi 0, %s43
      %s60 = sphi 0, %s44
      %s66 = sphi 0, %s68
      %s69 = sphi 0, %s66
      %s70 = sphi 0, %s69
      %s86 = sphi 0, %s70
      %s92 = sphi 0, %s94
      %s95 = sphi 0, %s92
      %s96 = sphi 0, %s95
      %s112 = sphi 0, %s96
      %s116 = sphi 0, %s116
      %s118 = sphi 0, %s116
      %s119 = sphi 0, %s118
      %s133 = sphi 0, %s119
      %s137 = sphi 0, %s137
      %s139 = sphi 0, %s137
      %s140 = sphi 0, %s139
      %s154 = sphi 0, %s140
      %s160 = sphi 0, %s162
      %s163 = sphi 0, %s160
      %s164 = sphi 0, %s163
      %s180 = sphi 0, %s164
    $region4: #{tpu_custom_call.1} parent=1 // loop_header_branch
      %19 = sbr.rel (%p17) target = $region8
    $region5: #{tpu_custom_call.1} parent=1 // loop_body
      %s21 = ssub.s32 %s16, 1
      %s22 = ssub.s32 %s16, 2
      %s29 = sadd.s32 1, %s24
      %p30 = scmp.ge.s32.totalorder %s29, 1
      %s31 = scalar_select %p30, 0, %s29
      %s32 = sadd.s32 1, %s23
      %s33 = scalar_select %p30, %s32, %s23
      %p34 = scmp.ge.s32.totalorder %s33, 2
      %s35 = scalar_select %p34, 0, %s33
      %s36 = ssub.s32 %s23, %s35
      %s37 = ssub.s32 %s24, %s31
      %s38 = sor.u32 %s36, %s37
      %p39 = scmp.eq.s32.totalorder %s38, 0
      %s41 = sadd.s32 %s40, 1
      %s42 = scalar_select %p39, %s40, %s41
      %p45 = pneg %p39
      %p46 = scmp.eq.s32.totalorder %s16, 1
      %p47 = por %p45, %p46
      %p48 = scmp.ne.s32.totalorder %s40, %s43
      %p49 = scmp.eq.s32.totalorder %s16, 0
      %p50 = por %p48, %p49
      %p51 = scmp.ne.s32.totalorder %s40, %s43
      %p52 = scmp.eq.s32.totalorder %s21, 1
      %p53 = por %p51, %p52
      %p54 = scmp.ne.s32.totalorder %s43, %s44
      %p55 = scmp.eq.s32.totalorder %s21, 0
      %p56 = por %p54, %p55
      %p57 = scmp.ne.s32.totalorder %s43, %s44
      %p58 = scmp.eq.s32.totalorder %s22, 1
      %p59 = por %p57, %p58
      %p61 = scmp.ne.s32.totalorder %s44, %s60
      %p62 = scmp.eq.s32.totalorder %s22, 0
      %p63 = por %p61, %p62
      %s64 = ssub.s32 %s24, %s31
      %p65 = scmp.eq.s32.totalorder %s64, 0
      %s67 = sadd.s32 %s66, 1
      %s68 = scalar_select %p65, %s66, %s67
      %p71 = pneg %p65
      %p72 = scmp.eq.s32.totalorder %s16, 1
      %p73 = por %p71, %p72
      %p74 = scmp.ne.s32.totalorder %s66, %s69
      %p75 = scmp.eq.s32.totalorder %s16, 0
      %p76 = por %p74, %p75
      %p77 = scmp.ne.s32.totalorder %s66, %s69
      %p78 = scmp.eq.s32.totalorder %s21, 1
      %p79 = por %p77, %p78
      %p80 = scmp.ne.s32.totalorder %s69, %s70
      %p81 = scmp.eq.s32.totalorder %s21, 0
      %p82 = por %p80, %p81
      %p83 = scmp.ne.s32.totalorder %s69, %s70
      %p84 = scmp.eq.s32.totalorder %s22, 1
      %p85 = por %p83, %p84
      %p87 = scmp.ne.s32.totalorder %s70, %s86
      %p88 = scmp.eq.s32.totalorder %s22, 0
      %p89 = por %p87, %p88
      %s90 = ssub.s32 %s23, %s35
      %p91 = scmp.eq.s32.totalorder %s90, 0
      %s93 = sadd.s32 %s92, 1
      %s94 = scalar_select %p91, %s92, %s93
      %p97 = pneg %p91
      %p98 = scmp.eq.s32.totalorder %s16, 1
      %p99 = por %p97, %p98
      %p100 = scmp.ne.s32.totalorder %s92, %s95
      %p101 = scmp.eq.s32.totalorder %s16, 0
      %p102 = por %p100, %p101
      %p103 = scmp.ne.s32.totalorder %s92, %s95
      %p104 = scmp.eq.s32.totalorder %s21, 1
      %p105 = por %p103, %p104
      %p106 = scmp.ne.s32.totalorder %s95, %s96
      %p107 = scmp.eq.s32.totalorder %s21, 0
      %p108 = por %p106, %p107
      %p109 = scmp.ne.s32.totalorder %s95, %s96
      %p110 = scmp.eq.s32.totalorder %s22, 1
      %p111 = por %p109, %p110
      %p113 = scmp.ne.s32.totalorder %s96, %s112
      %p114 = scmp.eq.s32.totalorder %s22, 0
      %p115 = por %p113, %p114
      %s117 = sadd.s32 %s116, 1
      %p120 = scmp.eq.s32.totalorder %s16, 1
      %p121 = scmp.ne.s32.totalorder %s116, %s118
      %p122 = scmp.eq.s32.totalorder %s16, 0
      %p123 = por %p121, %p122
      %p124 = scmp.ne.s32.totalorder %s116, %s118
      %p125 = scmp.eq.s32.totalorder %s21, 1
      %p126 = por %p124, %p125
      %p127 = scmp.ne.s32.totalorder %s118, %s119
      %p128 = scmp.eq.s32.totalorder %s21, 0
      %p129 = por %p127, %p128
      %p130 = scmp.ne.s32.totalorder %s118, %s119
      %p131 = scmp.eq.s32.totalorder %s22, 1
      %p132 = por %p130, %p131
      %p134 = scmp.ne.s32.totalorder %s119, %s133
      %p135 = scmp.eq.s32.totalorder %s22, 0
      %p136 = por %p134, %p135
      %s138 = sadd.s32 %s137, 1
      %p141 = scmp.eq.s32.totalorder %s16, 1
      %p142 = scmp.ne.s32.totalorder %s137, %s139
      %p143 = scmp.eq.s32.totalorder %s16, 0
      %p144 = por %p142, %p143
      %p145 = scmp.ne.s32.totalorder %s137, %s139
      %p146 = scmp.eq.s32.totalorder %s21, 1
      %p147 = por %p145, %p146
      %p148 = scmp.ne.s32.totalorder %s139, %s140
      %p149 = scmp.eq.s32.totalorder %s21, 0
      %p150 = por %p148, %p149
      %p151 = scmp.ne.s32.totalorder %s139, %s140
      %p152 = scmp.eq.s32.totalorder %s22, 1
      %p153 = por %p151, %p152
      %p155 = scmp.ne.s32.totalorder %s140, %s154
      %p156 = scmp.eq.s32.totalorder %s22, 0
      %p157 = por %p155, %p156
      %s158 = ssub.s32 %s23, %s35
      %p159 = scmp.eq.s32.totalorder %s158, 0
      %s161 = sadd.s32 %s160, 1
      %s162 = scalar_select %p159, %s160, %s161
      %p165 = pneg %p159
      %p166 = scmp.eq.s32.totalorder %s16, 1
      %p167 = por %p165, %p166
      %p168 = scmp.ne.s32.totalorder %s160, %s163
      %p169 = scmp.eq.s32.totalorder %s16, 0
      %p170 = por %p168, %p169
      %p171 = scmp.ne.s32.totalorder %s160, %s163
      %p172 = scmp.eq.s32.totalorder %s21, 1
      %p173 = por %p171, %p172
      %p174 = scmp.ne.s32.totalorder %s163, %s164
      %p175 = scmp.eq.s32.totalorder %s21, 0
      %p176 = por %p174, %p175
      %p177 = scmp.ne.s32.totalorder %s163, %s164
      %p178 = scmp.eq.s32.totalorder %s22, 1
      %p179 = por %p177, %p178
      %p181 = scmp.ne.s32.totalorder %s164, %s180
      %p182 = scmp.eq.s32.totalorder %s22, 0
      %p183 = por %p181, %p182
      %p184 = scmp.le.s32.totalorder 1, %s16
      %p185 = scmp.lt.s32.totalorder %s16, 3
      %p186 = pnand %p184, %p185
      %p187 = pneg %p186
      // Predicated region
      $region9: #{tpu_custom_call.1} parent=5 // pred_check
        _
      $region10: #{tpu_custom_call.1} parent=5 // pred_check_branch
        %189 = sbr.rel (%p186) target = $region12
      $region11: #{tpu_custom_call.1} parent=5 // pred_region
        %s190 = ssub.s32 %s16, 1
        // Predicated region
        $region13: #{tpu_custom_call.1} parent=11 // pred_check
          %p191 = pneg %p82
        $region14: #{tpu_custom_call.1} parent=11 // pred_check_branch
          %193 = sbr.rel (%p191) target = $region16
        $region15: #{tpu_custom_call.1} parent=11 // pred_region
          %s194 = smul.u32 32, %s26
          %p195 = scmp.lt.s32.totalorder %s194, 31
          %s196 = scalar_select %p195, %s194, 31
          %s197 = smul.addr %s196, 4
          %s198 = scalar_lea.vmem %s1, %s197
          %s199 = smul.u32 32, %s26
        $region16: #{tpu_custom_call.1} parent=11 // pred_fallthru
          _
        // Predicated region
        $region17: #{tpu_custom_call.1} parent=11 // pred_check
          %p200 = pneg %p129
        $region18: #{tpu_custom_call.1} parent=11 // pred_check_branch
          %202 = sbr.rel (%p200) target = $region20
        $region19: #{tpu_custom_call.1} parent=11 // pred_region
          %s204 = ssub.s32 1024, 1024
          %205 = vsyncadd [#allocation4], %s204
          %s206 = sshll.u32 [#allocation3], 4
          %s207 = int_to_ptr.vmem [resolvable:$true] %s206
          %212 = dma.hbm_to_vmem [thread:$0]  %s3, 1024, %s207, [#allocation4], 128, 128, 8
        $region20: #{tpu_custom_call.1} parent=11 // pred_fallthru
          _
        // Predicated region
        $region21: #{tpu_custom_call.1} parent=11 // pred_check
          %p213 = pneg %p150
        $region22: #{tpu_custom_call.1} parent=11 // pred_check_branch
          %215 = sbr.rel (%p213) target = $region24
        $region23: #{tpu_custom_call.1} parent=11 // pred_region
          %s217 = ssub.s32 2048, 2048
          %218 = vsyncadd [#allocation7], %s217
          %s219 = sshll.u32 [#allocation6], 4
          %s220 = int_to_ptr.vmem [resolvable:$true] %s219
          %225 = dma.hbm_to_vmem [thread:$0]  %s4, 2048, %s220, [#allocation7], 128, 128, 8
        $region24: #{tpu_custom_call.1} parent=11 // pred_fallthru
          _
      $region12: #{tpu_custom_call.1} parent=5 // pred_fallthru
        _
      %p226 = scmp.lt.s32.totalorder %s16, 2
      // Predicated region
      $region25: #{tpu_custom_call.1} parent=5 // pred_check
        %p227 = pneg %p226
      $region26: #{tpu_custom_call.1} parent=5 // pred_check_branch
        %229 = sbr.rel (%p227) target = $region28
      $region27: #{tpu_custom_call.1} parent=5 // pred_region
        // Predicated region
        $region29: #{tpu_custom_call.1} parent=27 // pred_check
          %p230 = pneg %p50
        $region30: #{tpu_custom_call.1} parent=27 // pred_check_branch
          %232 = sbr.rel (%p230) target = $region32
        $region31: #{tpu_custom_call.1} parent=27 // pred_region
          %s233 = smul.u32 16, %s23
          %s234 = smul.u32 2, %s24
          %p235 = scmp.lt.s32.totalorder %s233, 31
          %s236 = scalar_select %p235, %s233, 31
          %p237 = scmp.lt.s32.totalorder %s234, 1
          %s238 = scalar_select %p237, %s234, 1
          %s239 = smul.addr %s236, 2
          %s240 = sadd.s32 %s238, %s239
          %s241 = smul.addr %s240, 4
          %s242 = scalar_lea.vmem %s0, %s241
          %s243 = smul.u32 16, %s23
          %s244 = smul.u32 2, %s24
        $region32: #{tpu_custom_call.1} parent=27 // pred_fallthru
          _
        // Predicated region
        $region33: #{tpu_custom_call.1} parent=27 // pred_check
          %p245 = pneg %p102
        $region34: #{tpu_custom_call.1} parent=27 // pred_check_branch
          %247 = sbr.rel (%p245) target = $region36
        $region35: #{tpu_custom_call.1} parent=27 // pred_region
          %s248 = smul.u32 16, %s23
          %p249 = scmp.lt.s32.totalorder %s248, 31
          %s250 = scalar_select %p249, %s248, 31
          %s251 = smul.addr %s250, 8
          %s252 = scalar_lea.vmem %s2, %s251
          %s253 = smul.u32 16, %s23
        $region36: #{tpu_custom_call.1} parent=27 // pred_fallthru
          _
      $region28: #{tpu_custom_call.1} parent=5 // pred_fallthru
        _
      %p254 = scmp.le.s32.totalorder 1, %s16
      %p255 = scmp.lt.s32.totalorder %s16, 3
      %p256 = pnand %p254, %p255
      %p257 = pneg %p256
      // Predicated region
      $region37: #{tpu_custom_call.1} parent=5 // pred_check
        _
      $region38: #{tpu_custom_call.1} parent=5 // pred_check_branch
        %259 = sbr.rel (%p256) target = $region40
      $region39: #{tpu_custom_call.1} parent=5 // pred_region
        %s260 = ssub.s32 %s16, 1
        // Predicated region
        $region41: #{tpu_custom_call.1} parent=39 // pred_check
          %p261 = pneg %p129
        $region42: #{tpu_custom_call.1} parent=39 // pred_check_branch
          %263 = sbr.rel (%p261) target = $region44
        $region43: #{tpu_custom_call.1} parent=39 // pred_region
          %264 = dma.done [#allocation4], 1024
        $region44: #{tpu_custom_call.1} parent=39 // pred_fallthru
          _
        // Predicated region
        $region45: #{tpu_custom_call.1} parent=39 // pred_check
          %p265 = pneg %p150
        $region46: #{tpu_custom_call.1} parent=39 // pred_check_branch
          %267 = sbr.rel (%p265) target = $region48
        $region47: #{tpu_custom_call.1} parent=39 // pred_region
          %268 = dma.done [#allocation7], 2048
        $region48: #{tpu_custom_call.1} parent=39 // pred_fallthru
          _
        %s269 = smul.u32 16, %s25
        %s270 = smul.u32 2, %s26
        %p271 = scmp.lt.s32.totalorder %s269, 31
        %s272 = scalar_select %p271, %s269, 31
        %p273 = scmp.lt.s32.totalorder %s270, 1
        %s274 = scalar_select %p273, %s270, 1
        %s275 = smul.addr %s272, 2
        %s276 = sadd.s32 %s274, %s275
        %s277 = smul.addr %s276, 4
        %s278 = scalar_lea.vmem %s0, %s277
        %p279 = pneg %p56
        %p280 = pneg %p53
        %s281 = smul.u32 32, %s26
        %p282 = scmp.lt.s32.totalorder %s281, 31
        %s283 = scalar_select %p282, %s281, 31
        %s284 = smul.addr %s283, 4
        %s285 = scalar_lea.vmem %s1, %s284
        %p286 = pneg %p82
        %p287 = pneg %p79
        %s288 = smul.u32 16, %s25
        %p289 = scmp.lt.s32.totalorder %s288, 31
        %s290 = scalar_select %p289, %s288, 31
        %s291 = smul.addr %s290, 8
        %s292 = scalar_lea.vmem %s2, %s291
        %p293 = pneg %p108
        %p294 = pneg %p105
        %p295 = pneg %p129
        %p296 = pneg %p126
        %p297 = pneg %p150
        %p298 = pneg %p147
        %p299 = pneg %p176
        %p300 = pneg %p173
        %s301 = sand.u32 %s163, 1
        %s302 = scalar_lea.sflag [#allocation5], %s301
        %s303 = sand.u32 %s163, 1
        %s304 = smul.addr %s303, 128
        %s305 = scalar_lea.vmem [#allocation8], %s304
        %s306 = smul.u32 16, %s25
        %s307 = smul.u32 2, %s26
        %p308 = scmp.lt.s32.totalorder %s306, 31
        %s309 = scalar_select %p308, %s306, 31
        %p310 = scmp.lt.s32.totalorder %s307, 1
        %s311 = scalar_select %p310, %s307, 1
        %s312 = smul.addr %s309, 2
        %s313 = sadd.s32 %s311, %s312
        %s314 = smul.addr %s313, 4
        %s315 = scalar_lea.vmem %s0, %s314
        %s316 = smul.u32 16, %s25
        %s317 = smul.u32 2, %s26
        %s318 = smul.u32 32, %s26
        %p319 = scmp.lt.s32.totalorder %s318, 31
        %s320 = scalar_select %p319, %s318, 31
        %s321 = smul.addr %s320, 4
        %s322 = scalar_lea.vmem %s1, %s321
        %s323 = smul.u32 32, %s26
        %s324 = smul.u32 16, %s25
        %p325 = scmp.lt.s32.totalorder %s324, 31
        %s326 = scalar_select %p325, %s324, 31
        %s327 = smul.addr %s326, 8
        %s328 = scalar_lea.vmem %s2, %s327
        %s329 = smul.u32 16, %s25
        %s330 = smul.u32 16, %s25
        %p332 = scmp.eq.s32.totalorder %s26, 0
        // Predicated region
        $region49: #{tpu_custom_call.1} parent=39 // pred_check
          %p333 = pneg %p332
        $region50: #{tpu_custom_call.1} parent=39 // pred_check_branch
          %335 = sbr.rel (%p333) target = $region52
        $region51: #{tpu_custom_call.1} parent=39 // pred_region
          %336 = vst [vmem:[#allocation2] sm:$0xff] 0.0
          %337 = vst [vmem:[#allocation2 + $0x8] sm:$0xff] 0.0
          %338 = vst [vmem:[#allocation2 + $0x10] sm:$0xff] 0.0
          %339 = vst [vmem:[#allocation2 + $0x18] sm:$0xff] 0.0
          %340 = vst [vmem:[#allocation2 + $0x20] sm:$0xff] 0.0
          %341 = vst [vmem:[#allocation2 + $0x28] sm:$0xff] 0.0
          %342 = vst [vmem:[#allocation2 + $0x30] sm:$0xff] 0.0
          %343 = vst [vmem:[#allocation2 + $0x38] sm:$0xff] 0.0
          %344 = vst [vmem:[#allocation2 + $0x40] sm:$0xff] 0.0
          %345 = vst [vmem:[#allocation2 + $0x48] sm:$0xff] 0.0
          %346 = vst [vmem:[#allocation2 + $0x50] sm:$0xff] 0.0
          %347 = vst [vmem:[#allocation2 + $0x58] sm:$0xff] 0.0
          %348 = vst [vmem:[#allocation2 + $0x60] sm:$0xff] 0.0
          %349 = vst [vmem:[#allocation2 + $0x68] sm:$0xff] 0.0
          %350 = vst [vmem:[#allocation2 + $0x70] sm:$0xff] 0.0
          %351 = vst [vmem:[#allocation2 + $0x78] sm:$0xff] 0.0
        $region52: #{tpu_custom_call.1} parent=39 // pred_fallthru
          _
        %v352 = vld [vmem:[#allocation2] sm:$0xff]
        %v353 = vld [vmem:[#allocation2 + $0x8] sm:$0xff]
        %v354 = vld [vmem:[#allocation2 + $0x10] sm:$0xff]
        %v355 = vld [vmem:[#allocation2 + $0x18] sm:$0xff]
        %v356 = vld [vmem:[#allocation2 + $0x20] sm:$0xff]
        %v357 = vld [vmem:[#allocation2 + $0x28] sm:$0xff]
        %v358 = vld [vmem:[#allocation2 + $0x30] sm:$0xff]
        %v359 = vld [vmem:[#allocation2 + $0x38] sm:$0xff]
        %v360 = vld [vmem:[#allocation2 + $0x40] sm:$0xff]
        %v361 = vld [vmem:[#allocation2 + $0x48] sm:$0xff]
        %v362 = vld [vmem:[#allocation2 + $0x50] sm:$0xff]
        %v363 = vld [vmem:[#allocation2 + $0x58] sm:$0xff]
        %v364 = vld [vmem:[#allocation2 + $0x60] sm:$0xff]
        %v365 = vld [vmem:[#allocation2 + $0x68] sm:$0xff]
        %v366 = vld [vmem:[#allocation2 + $0x70] sm:$0xff]
        %v367 = vld [vmem:[#allocation2 + $0x78] sm:$0xff]
        %v368 = vld [vmem:[%s315] sm:$0xff]
        %v369 = vld [vmem:[%s315 + $0x8] sm:$0xff]
        %v370 = vld [vmem:[%s315 + $0x10] sm:$0xff]
        %v371 = vld [vmem:[%s315 + $0x18] sm:$0xff]
        %v372 = vld [vmem:[%s315 + $0x20] sm:$0xff]
        %v373 = vld [vmem:[%s315 + $0x28] sm:$0xff]
        %v374 = vld [vmem:[%s315 + $0x30] sm:$0xff]
        %v375 = vld [vmem:[%s315 + $0x38] sm:$0xff]
        %v376 = vld [vmem:[%s315 + $0x40] sm:$0xff]
        %v377 = vld [vmem:[%s315 + $0x48] sm:$0xff]
        %v378 = vld [vmem:[%s315 + $0x50] sm:$0xff]
        %v379 = vld [vmem:[%s315 + $0x58] sm:$0xff]
        %v380 = vld [vmem:[%s315 + $0x60] sm:$0xff]
        %v381 = vld [vmem:[%s315 + $0x68] sm:$0xff]
        %v382 = vld [vmem:[%s315 + $0x70] sm:$0xff]
        %v383 = vld [vmem:[%s315 + $0x78] sm:$0xff]
        %v384 = vld [vmem:[%s322] sm:$0xf]
        %v385 = vld [vmem:[%s322 + $0x4] sm:$0xf]
        %v386 = vld [vmem:[%s322 + $0x8] sm:$0xf]
        %v387 = vld [vmem:[%s322 + $0xc] sm:$0xf]
        %v388 = vld [vmem:[%s322 + $0x10] sm:$0xf]
        %v389 = vld [vmem:[%s322 + $0x14] sm:$0xf]
        %v390 = vld [vmem:[%s322 + $0x18] sm:$0xf]
        %v391 = vld [vmem:[%s322 + $0x1c] sm:$0xf]
        %v392 = vld [vmem:[%s322 + $0x20] sm:$0xf]
        %v393 = vld [vmem:[%s322 + $0x24] sm:$0xf]
        %v394 = vld [vmem:[%s322 + $0x28] sm:$0xf]
        %v395 = vld [vmem:[%s322 + $0x2c] sm:$0xf]
        %v396 = vld [vmem:[%s322 + $0x30] sm:$0xf]
        %v397 = vld [vmem:[%s322 + $0x34] sm:$0xf]
        %v398 = vld [vmem:[%s322 + $0x38] sm:$0xf]
        %v399 = vld [vmem:[%s322 + $0x3c] sm:$0xf]
        %v400 = vld [vmem:[%s322 + $0x40] sm:$0xf]
        %v401 = vld [vmem:[%s322 + $0x44] sm:$0xf]
        %v402 = vld [vmem:[%s322 + $0x48] sm:$0xf]
        %v403 = vld [vmem:[%s322 + $0x4c] sm:$0xf]
        %v404 = vld [vmem:[%s322 + $0x50] sm:$0xf]
        %v405 = vld [vmem:[%s322 + $0x54] sm:$0xf]
        %v406 = vld [vmem:[%s322 + $0x58] sm:$0xf]
        %v407 = vld [vmem:[%s322 + $0x5c] sm:$0xf]
        %v408 = vld [vmem:[%s322 + $0x60] sm:$0xf]
        %v409 = vld [vmem:[%s322 + $0x64] sm:$0xf]
        %v410 = vld [vmem:[%s322 + $0x68] sm:$0xf]
        %v411 = vld [vmem:[%s322 + $0x6c] sm:$0xf]
        %v412 = vld [vmem:[%s322 + $0x70] sm:$0xf]
        %v413 = vld [vmem:[%s322 + $0x74] sm:$0xf]
        %v414 = vld [vmem:[%s322 + $0x78] sm:$0xf]
        %v415 = vld [vmem:[%s322 + $0x7c] sm:$0xf]
        %v432 = vunpack.c.l.b16 %v368
        %v433 = vunpack.c.h.b16 %v368
        %v434 = vunpack.c.l.b16 %v369
        %v435 = vunpack.c.h.b16 %v369
        %v436 = vunpack.c.l.b16 %v370
        %v437 = vunpack.c.h.b16 %v370
        %v438 = vunpack.c.l.b16 %v371
        %v439 = vunpack.c.h.b16 %v371
        %v440 = vunpack.c.l.b16 %v372
        %v441 = vunpack.c.h.b16 %v372
        %v442 = vunpack.c.l.b16 %v373
        %v443 = vunpack.c.h.b16 %v373
        %v444 = vunpack.c.l.b16 %v374
        %v445 = vunpack.c.h.b16 %v374
        %v446 = vunpack.c.l.b16 %v375
        %v447 = vunpack.c.h.b16 %v375
        %v448 = vunpack.c.l.b16 %v376
        %v449 = vunpack.c.h.b16 %v376
        %v450 = vunpack.c.l.b16 %v377
        %v451 = vunpack.c.h.b16 %v377
        %v452 = vunpack.c.l.b16 %v378
        %v453 = vunpack.c.h.b16 %v378
        %v454 = vunpack.c.l.b16 %v379
        %v455 = vunpack.c.h.b16 %v379
        %v456 = vunpack.c.l.b16 %v380
        %v457 = vunpack.c.h.b16 %v380
        %v458 = vunpack.c.l.b16 %v381
        %v459 = vunpack.c.h.b16 %v381
        %v460 = vunpack.c.l.b16 %v382
        %v461 = vunpack.c.h.b16 %v382
        %v462 = vunpack.c.l.b16 %v383
        %v463 = vunpack.c.h.b16 %v383
        %v464 = vpack.c.b16 %v434, %v432
        %v465 = vpack.c.b16 %v435, %v433
        %v466 = vpack.c.b16 %v438, %v436
        %v467 = vpack.c.b16 %v439, %v437
        %v468 = vpack.c.b16 %v442, %v440
        %v469 = vpack.c.b16 %v443, %v441
        %v470 = vpack.c.b16 %v446, %v444
        %v471 = vpack.c.b16 %v447, %v445
        %v472 = vpack.c.b16 %v450, %v448
        %v473 = vpack.c.b16 %v451, %v449
        %v474 = vpack.c.b16 %v454, %v452
        %v475 = vpack.c.b16 %v455, %v453
        %v476 = vpack.c.b16 %v458, %v456
        %v477 = vpack.c.b16 %v459, %v457
        %v478 = vpack.c.b16 %v462, %v460
        %v479 = vpack.c.b16 %v463, %v461
        %v528 = vunpack.c.l.b16 %v384
        %v529 = vunpack.c.l.b16 %v385
        %v530 = vunpack.c.l.b16 %v386
        %v531 = vunpack.c.l.b16 %v387
        %v532 = vunpack.c.l.b16 %v388
        %v533 = vunpack.c.l.b16 %v389
        %v534 = vunpack.c.l.b16 %v390
        %v535 = vunpack.c.l.b16 %v391
        %v536 = vunpack.c.l.b16 %v392
        %v537 = vunpack.c.l.b16 %v393
        %v538 = vunpack.c.l.b16 %v394
        %v539 = vunpack.c.l.b16 %v395
        %v540 = vunpack.c.l.b16 %v396
        %v541 = vunpack.c.l.b16 %v397
        %v542 = vunpack.c.l.b16 %v398
        %v543 = vunpack.c.l.b16 %v399
        %v544 = vunpack.c.l.b16 %v400
        %v545 = vunpack.c.l.b16 %v401
        %v546 = vunpack.c.l.b16 %v402
        %v547 = vunpack.c.l.b16 %v403
        %v548 = vunpack.c.l.b16 %v404
        %v549 = vunpack.c.l.b16 %v405
        %v550 = vunpack.c.l.b16 %v406
        %v551 = vunpack.c.l.b16 %v407
        %v552 = vunpack.c.l.b16 %v408
        %v553 = vunpack.c.l.b16 %v409
        %v554 = vunpack.c.l.b16 %v410
        %v555 = vunpack.c.l.b16 %v411
        %v556 = vunpack.c.l.b16 %v412
        %v557 = vunpack.c.l.b16 %v413
        %v558 = vunpack.c.l.b16 %v414
        %v559 = vunpack.c.l.b16 %v415
        %v560 = vpack.c.b16 %v529, %v528
        %v561 = vpack.c.b16 %v531, %v530
        %v562 = vpack.c.b16 %v533, %v532
        %v563 = vpack.c.b16 %v535, %v534
        %v564 = vpack.c.b16 %v537, %v536
        %v565 = vpack.c.b16 %v539, %v538
        %v566 = vpack.c.b16 %v541, %v540
        %v567 = vpack.c.b16 %v543, %v542
        %v568 = vpack.c.b16 %v545, %v544
        %v569 = vpack.c.b16 %v547, %v546
        %v570 = vpack.c.b16 %v549, %v548
        %v571 = vpack.c.b16 %v551, %v550
        %v572 = vpack.c.b16 %v553, %v552
        %v573 = vpack.c.b16 %v555, %v554
        %v574 = vpack.c.b16 %v557, %v556
        %v575 = vpack.c.b16 %v559, %v558
        %592 = vmatprep.subr.bf16.mxu0 0
        %593 = vmatpush1.bf16.msra.mxu0 %v567
        %594 = vmatprep.subr.bf16.mxu0 0
        %595 = vmatpush1.bf16.msra.mxu0 %v566
        %596 = vmatprep.subr.bf16.mxu0 0
        %597 = vmatpush1.bf16.msra.mxu0 %v565
        %598 = vmatprep.subr.bf16.mxu0 0
        %599 = vmatpush1.bf16.msra.mxu0 %v564
        %600 = vmatprep.subr.bf16.mxu0 0
        %601 = vmatpush1.bf16.msra.mxu0 %v563
        %602 = vmatprep.subr.bf16.mxu0 0
        %603 = vmatpush1.bf16.msra.mxu0 %v562
        %604 = vmatprep.subr.bf16.mxu0 0
        %605 = vmatpush1.bf16.msra.mxu0 %v561
        %606 = vmatprep.subr.bf16.mxu0 0
        %607 = vmatpush1.bf16.msra.mxu0 %v560
        %608 = vmatprep.subr.bf16.mxu0 0
        %609 = vmatpush2.bf16.msra.mxu0 %v575
        %610 = vmatprep.subr.bf16.mxu0 0
        %611 = vmatpush2.bf16.msra.mxu0 %v574
        %612 = vmatprep.subr.bf16.mxu0 0
        %613 = vmatpush2.bf16.msra.mxu0 %v573
        %614 = vmatprep.subr.bf16.mxu0 0
        %615 = vmatpush2.bf16.msra.mxu0 %v572
        %616 = vmatprep.subr.bf16.mxu0 0
        %617 = vmatpush2.bf16.msra.mxu0 %v571
        %618 = vmatprep.subr.bf16.mxu0 0
        %619 = vmatpush2.bf16.msra.mxu0 %v570
        %620 = vmatprep.subr.bf16.mxu0 0
        %621 = vmatpush2.bf16.msra.mxu0 %v569
        %622 = vmatprep.subr.bf16.mxu0 0
        %623 = vmatpush2.bf16.msra.mxu0 %v568
        %624 = vmatprep.mubr.bf16.mxu0 %v465
        %625 = vmatmul.mubr.bf16.gmra.mxu0 %v464
        %v626 = vpop.f32.mrf.mxu0
        %v627 = vadd.f32 0.0, %v626
        %v628 = vpop.f32.mrf.mxu0
        %v629 = vpop.f32.mrf.mxu0
        %v630 = vadd.f32 0.0, %v629
        %v631 = vpop.f32.mrf.mxu0
        %632 = vmatprep.mubr.bf16.mxu0 %v467
        %633 = vmatmul.mubr.bf16.gmra.mxu0 %v466
        %v634 = vpop.f32.mrf.mxu0
        %v635 = vadd.f32 0.0, %v634
        %v636 = vpop.f32.mrf.mxu0
        %v637 = vpop.f32.mrf.mxu0
        %v638 = vadd.f32 0.0, %v637
        %v639 = vpop.f32.mrf.mxu0
        %640 = vmatprep.mubr.bf16.mxu0 %v469
        %641 = vmatmul.mubr.bf16.gmra.mxu0 %v468
        %v642 = vpop.f32.mrf.mxu0
        %v643 = vadd.f32 0.0, %v642
        %v644 = vpop.f32.mrf.mxu0
        %v645 = vpop.f32.mrf.mxu0
        %v646 = vadd.f32 0.0, %v645
        %v647 = vpop.f32.mrf.mxu0
        %648 = vmatprep.mubr.bf16.mxu0 %v471
        %649 = vmatmul.mubr.bf16.gmra.mxu0 %v470
        %v650 = vpop.f32.mrf.mxu0
        %v651 = vadd.f32 0.0, %v650
        %v652 = vpop.f32.mrf.mxu0
        %v653 = vpop.f32.mrf.mxu0
        %v654 = vadd.f32 0.0, %v653
        %v655 = vpop.f32.mrf.mxu0
        %656 = vmatprep.mubr.bf16.mxu0 %v473
        %657 = vmatmul.mubr.bf16.gmra.mxu0 %v472
        %v658 = vpop.f32.mrf.mxu0
        %v659 = vadd.f32 0.0, %v658
        %v660 = vpop.f32.mrf.mxu0
        %v661 = vpop.f32.mrf.mxu0
        %v662 = vadd.f32 0.0, %v661
        %v663 = vpop.f32.mrf.mxu0
        %664 = vmatprep.mubr.bf16.mxu0 %v475
        %665 = vmatmul.mubr.bf16.gmra.mxu0 %v474
        %v666 = vpop.f32.mrf.mxu0
        %v667 = vadd.f32 0.0, %v666
        %v668 = vpop.f32.mrf.mxu0
        %v669 = vpop.f32.mrf.mxu0
        %v670 = vadd.f32 0.0, %v669
        %v671 = vpop.f32.mrf.mxu0
        %672 = vmatprep.mubr.bf16.mxu0 %v477
        %673 = vmatmul.mubr.bf16.gmra.mxu0 %v476
        %v674 = vpop.f32.mrf.mxu0
        %v675 = vadd.f32 0.0, %v674
        %v676 = vpop.f32.mrf.mxu0
        %v677 = vpop.f32.mrf.mxu0
        %v678 = vadd.f32 0.0, %v677
        %v679 = vpop.f32.mrf.mxu0
        %680 = vmatprep.mubr.bf16.mxu0 %v479
        %681 = vmatmul.mubr.bf16.gmra.mxu0 %v478
        %v682 = vpop.f32.mrf.mxu0
        %v683 = vadd.f32 0.0, %v682
        %v684 = vpop.f32.mrf.mxu0
        %v685 = vpop.f32.mrf.mxu0
        %v686 = vadd.f32 0.0, %v685
        %v687 = vpop.f32.mrf.mxu0
        %688 = vdwg.mxu0
        %v689 = vadd.f32 %v352, %v627
        %v690 = vadd.f32 %v353, %v630
        %v691 = vadd.f32 %v354, %v635
        %v692 = vadd.f32 %v355, %v638
        %v693 = vadd.f32 %v356, %v643
        %v694 = vadd.f32 %v357, %v646
        %v695 = vadd.f32 %v358, %v651
        %v696 = vadd.f32 %v359, %v654
        %v697 = vadd.f32 %v360, %v659
        %v698 = vadd.f32 %v361, %v662
        %v699 = vadd.f32 %v362, %v667
        %v700 = vadd.f32 %v363, %v670
        %v701 = vadd.f32 %v364, %v675
        %v702 = vadd.f32 %v365, %v678
        %v703 = vadd.f32 %v366, %v683
        %v704 = vadd.f32 %v367, %v686
        %705 = vst [vmem:[#allocation2] sm:$0xff] %v689
        %706 = vst [vmem:[#allocation2 + $0x8] sm:$0xff] %v690
        %707 = vst [vmem:[#allocation2 + $0x10] sm:$0xff] %v691
        %708 = vst [vmem:[#allocation2 + $0x18] sm:$0xff] %v692
        %709 = vst [vmem:[#allocation2 + $0x20] sm:$0xff] %v693
        %710 = vst [vmem:[#allocation2 + $0x28] sm:$0xff] %v694
        %711 = vst [vmem:[#allocation2 + $0x30] sm:$0xff] %v695
        %712 = vst [vmem:[#allocation2 + $0x38] sm:$0xff] %v696
        %713 = vst [vmem:[#allocation2 + $0x40] sm:$0xff] %v697
        %714 = vst [vmem:[#allocation2 + $0x48] sm:$0xff] %v698
        %715 = vst [vmem:[#allocation2 + $0x50] sm:$0xff] %v699
        %716 = vst [vmem:[#allocation2 + $0x58] sm:$0xff] %v700
        %717 = vst [vmem:[#allocation2 + $0x60] sm:$0xff] %v701
        %718 = vst [vmem:[#allocation2 + $0x68] sm:$0xff] %v702
        %719 = vst [vmem:[#allocation2 + $0x70] sm:$0xff] %v703
        %720 = vst [vmem:[#allocation2 + $0x78] sm:$0xff] %v704
        // Predicated region
        $region53: #{tpu_custom_call.1} parent=39 // pred_check
          %p721 = pneg %p332
        $region54: #{tpu_custom_call.1} parent=39 // pred_check_branch
          %723 = sbr.rel (%p721) target = $region56
        $region55: #{tpu_custom_call.1} parent=39 // pred_region
          %v724 = vld [vmem:[#allocation2] sm:$0xff]
          %v725 = vld [vmem:[#allocation2 + $0x8] sm:$0xff]
          %v726 = vld [vmem:[#allocation2 + $0x10] sm:$0xff]
          %v727 = vld [vmem:[#allocation2 + $0x18] sm:$0xff]
          %v728 = vld [vmem:[#allocation2 + $0x20] sm:$0xff]
          %v729 = vld [vmem:[#allocation2 + $0x28] sm:$0xff]
          %v730 = vld [vmem:[#allocation2 + $0x30] sm:$0xff]
          %v731 = vld [vmem:[#allocation2 + $0x38] sm:$0xff]
          %v732 = vld [vmem:[#allocation2 + $0x40] sm:$0xff]
          %v733 = vld [vmem:[#allocation2 + $0x48] sm:$0xff]
          %v734 = vld [vmem:[#allocation2 + $0x50] sm:$0xff]
          %v735 = vld [vmem:[#allocation2 + $0x58] sm:$0xff]
          %v736 = vld [vmem:[#allocation2 + $0x60] sm:$0xff]
          %v737 = vld [vmem:[#allocation2 + $0x68] sm:$0xff]
          %v738 = vld [vmem:[#allocation2 + $0x70] sm:$0xff]
          %v739 = vld [vmem:[#allocation2 + $0x78] sm:$0xff]
          %v740 = vrcp.pop %v724
          %v741 = vrcp.pop %v725
          %v742 = vrcp.pop %v726
          %v743 = vrcp.pop %v727
          %v744 = vrcp.pop %v728
          %v745 = vrcp.pop %v729
          %v746 = vrcp.pop %v730
          %v747 = vrcp.pop %v731
          %v748 = vrcp.pop %v732
          %v749 = vrcp.pop %v733
          %v750 = vrcp.pop %v734
          %v751 = vrcp.pop %v735
          %v752 = vrcp.pop %v736
          %v753 = vrcp.pop %v737
          %v754 = vrcp.pop %v738
          %v755 = vrcp.pop %v739
          %757 = vset.pattern.permute.xlu0 64
          %758 = vperm.xlu0 %757, %v740
          %v759 = vpop.permute.xlu0 %758
          %762 = vset.pattern.permute.xlu0 64
          %763 = vperm.xlu0 %762, %v741
          %v764 = vpop.permute.xlu0 %763
          %767 = vset.pattern.permute.xlu0 64
          %768 = vperm.xlu0 %767, %v742
          %v769 = vpop.permute.xlu0 %768
          %772 = vset.pattern.permute.xlu0 64
          %773 = vperm.xlu0 %772, %v743
          %v774 = vpop.permute.xlu0 %773
          %777 = vset.pattern.permute.xlu0 64
          %778 = vperm.xlu0 %777, %v744
          %v779 = vpop.permute.xlu0 %778
          %782 = vset.pattern.permute.xlu0 64
          %783 = vperm.xlu0 %782, %v745
          %v784 = vpop.permute.xlu0 %783
          %787 = vset.pattern.permute.xlu0 64
          %788 = vperm.xlu0 %787, %v746
          %v789 = vpop.permute.xlu0 %788
          %792 = vset.pattern.permute.xlu0 64
          %793 = vperm.xlu0 %792, %v747
          %v794 = vpop.permute.xlu0 %793
          %797 = vset.pattern.permute.xlu0 64
          %798 = vperm.xlu0 %797, %v748
          %v799 = vpop.permute.xlu0 %798
          %802 = vset.pattern.permute.xlu0 64
          %803 = vperm.xlu0 %802, %v749
          %v804 = vpop.permute.xlu0 %803
          %807 = vset.pattern.permute.xlu0 64
          %808 = vperm.xlu0 %807, %v750
          %v809 = vpop.permute.xlu0 %808
          %812 = vset.pattern.permute.xlu0 64
          %813 = vperm.xlu0 %812, %v751
          %v814 = vpop.permute.xlu0 %813
          %817 = vset.pattern.permute.xlu0 64
          %818 = vperm.xlu0 %817, %v752
          %v819 = vpop.permute.xlu0 %818
          %822 = vset.pattern.permute.xlu0 64
          %823 = vperm.xlu0 %822, %v753
          %v824 = vpop.permute.xlu0 %823
          %827 = vset.pattern.permute.xlu0 64
          %828 = vperm.xlu0 %827, %v754
          %v829 = vpop.permute.xlu0 %828
          %832 = vset.pattern.permute.xlu0 64
          %833 = vperm.xlu0 %832, %v755
          %v834 = vpop.permute.xlu0 %833
          %v836 = vmul.f32 %v724, %v759
          %v837 = vmul.f32 %v725, %v764
          %v838 = vmul.f32 %v726, %v769
          %v839 = vmul.f32 %v727, %v774
          %v840 = vmul.f32 %v728, %v779
          %v841 = vmul.f32 %v729, %v784
          %v842 = vmul.f32 %v730, %v789
          %v843 = vmul.f32 %v731, %v794
          %v844 = vmul.f32 %v732, %v799
          %v845 = vmul.f32 %v733, %v804
          %v846 = vmul.f32 %v734, %v809
          %v847 = vmul.f32 %v735, %v814
          %v848 = vmul.f32 %v736, %v819
          %v849 = vmul.f32 %v737, %v824
          %v850 = vmul.f32 %v738, %v829
          %v851 = vmul.f32 %v739, %v834
          %v852 = vld [vmem:[%s328] sm:$0xff]
          %v853 = vld [vmem:[%s328 + $0x8] sm:$0xff]
          %v854 = vld [vmem:[%s328 + $0x10] sm:$0xff]
          %v855 = vld [vmem:[%s328 + $0x18] sm:$0xff]
          %v856 = vld [vmem:[%s328 + $0x20] sm:$0xff]
          %v857 = vld [vmem:[%s328 + $0x28] sm:$0xff]
          %v858 = vld [vmem:[%s328 + $0x30] sm:$0xff]
          %v859 = vld [vmem:[%s328 + $0x38] sm:$0xff]
          %v860 = vld [vmem:[%s328 + $0x40] sm:$0xff]
          %v861 = vld [vmem:[%s328 + $0x48] sm:$0xff]
          %v862 = vld [vmem:[%s328 + $0x50] sm:$0xff]
          %v863 = vld [vmem:[%s328 + $0x58] sm:$0xff]
          %v864 = vld [vmem:[%s328 + $0x60] sm:$0xff]
          %v865 = vld [vmem:[%s328 + $0x68] sm:$0xff]
          %v866 = vld [vmem:[%s328 + $0x70] sm:$0xff]
          %v867 = vld [vmem:[%s328 + $0x78] sm:$0xff]
          %v868 = vld [vmem:[#allocation3] sm:$0xff]
          %v869 = vld [vmem:[#allocation3 + $0x8] sm:$0xff]
          %v870 = vld [vmem:[#allocation3 + $0x10] sm:$0xff]
          %v871 = vld [vmem:[#allocation3 + $0x18] sm:$0xff]
          %v872 = vld [vmem:[#allocation3 + $0x20] sm:$0xff]
          %v873 = vld [vmem:[#allocation3 + $0x28] sm:$0xff]
          %v874 = vld [vmem:[#allocation3 + $0x30] sm:$0xff]
          %v875 = vld [vmem:[#allocation3 + $0x38] sm:$0xff]
          %v876 = vld [vmem:[#allocation6] sm:$0xff]
          %v877 = vld [vmem:[#allocation6 + $0x8] sm:$0xff]
          %v878 = vld [vmem:[#allocation6 + $0x10] sm:$0xff]
          %v879 = vld [vmem:[#allocation6 + $0x18] sm:$0xff]
          %v880 = vld [vmem:[#allocation6 + $0x20] sm:$0xff]
          %v881 = vld [vmem:[#allocation6 + $0x28] sm:$0xff]
          %v882 = vld [vmem:[#allocation6 + $0x30] sm:$0xff]
          %v883 = vld [vmem:[#allocation6 + $0x38] sm:$0xff]
          %v884 = vld [vmem:[#allocation6 + $0x40] sm:$0xff]
          %v885 = vld [vmem:[#allocation6 + $0x48] sm:$0xff]
          %v886 = vld [vmem:[#allocation6 + $0x50] sm:$0xff]
          %v887 = vld [vmem:[#allocation6 + $0x58] sm:$0xff]
          %v888 = vld [vmem:[#allocation6 + $0x60] sm:$0xff]
          %v889 = vld [vmem:[#allocation6 + $0x68] sm:$0xff]
          %v890 = vld [vmem:[#allocation6 + $0x70] sm:$0xff]
          %v891 = vld [vmem:[#allocation6 + $0x78] sm:$0xff]
          %892 = vmatprep.subr.mxu0 0.0
          %893 = vmatpush1.msra.mxu0 %v891
          %894 = vmatprep.subr.mxu0 0.0
          %895 = vmatpush1.msra.mxu0 %v890
          %896 = vmatprep.subr.mxu0 0.0
          %897 = vmatpush1.msra.mxu0 %v889
          %898 = vmatprep.subr.mxu0 0.0
          %899 = vmatpush1.msra.mxu0 %v888
          %900 = vmatprep.subr.mxu0 0.0
          %901 = vmatpush1.msra.mxu0 %v887
          %902 = vmatprep.subr.mxu0 0.0
          %903 = vmatpush1.msra.mxu0 %v886
          %904 = vmatprep.subr.mxu0 0.0
          %905 = vmatpush1.msra.mxu0 %v885
          %906 = vmatprep.subr.mxu0 0.0
          %907 = vmatpush1.msra.mxu0 %v884
          %908 = vmatprep.subr.mxu0 0.0
          %909 = vmatpush1.msra.mxu0 %v883
          %910 = vmatprep.subr.mxu0 0.0
          %911 = vmatpush1.msra.mxu0 %v882
          %912 = vmatprep.subr.mxu0 0.0
          %913 = vmatpush1.msra.mxu0 %v881
          %914 = vmatprep.subr.mxu0 0.0
          %915 = vmatpush1.msra.mxu0 %v880
          %916 = vmatprep.subr.mxu0 0.0
          %917 = vmatpush1.msra.mxu0 %v879
          %918 = vmatprep.subr.mxu0 0.0
          %919 = vmatpush1.msra.mxu0 %v878
          %920 = vmatprep.subr.mxu0 0.0
          %921 = vmatpush1.msra.mxu0 %v877
          %922 = vmatprep.subr.mxu0 0.0
          %923 = vmatpush1.msra.mxu0 %v876
          %924 = vmatprep.subr.mxu0 0.0
          %925 = vmatpush2.msra.mxu0 0.0
          %926 = vmatprep.subr.mxu0 0.0
          %927 = vmatpush2.msra.mxu0 0.0
          %928 = vmatprep.subr.mxu0 0.0
          %929 = vmatpush2.msra.mxu0 0.0
          %930 = vmatprep.subr.mxu0 0.0
          %931 = vmatpush2.msra.mxu0 0.0
          %932 = vmatprep.subr.mxu0 0.0
          %933 = vmatpush2.msra.mxu0 0.0
          %934 = vmatprep.subr.mxu0 0.0
          %935 = vmatpush2.msra.mxu0 0.0
          %936 = vmatprep.subr.mxu0 0.0
          %937 = vmatpush2.msra.mxu0 0.0
          %938 = vmatprep.subr.mxu0 0.0
          %939 = vmatpush2.msra.mxu0 0.0
          %940 = vmatprep.subr.mxu0 0.0
          %941 = vmatpush2.msra.mxu0 0.0
          %942 = vmatprep.subr.mxu0 0.0
          %943 = vmatpush2.msra.mxu0 0.0
          %944 = vmatprep.subr.mxu0 0.0
          %945 = vmatpush2.msra.mxu0 0.0
          %946 = vmatprep.subr.mxu0 0.0
          %947 = vmatpush2.msra.mxu0 0.0
          %948 = vmatprep.subr.mxu0 0.0
          %949 = vmatpush2.msra.mxu0 0.0
          %950 = vmatprep.subr.mxu0 0.0
          %951 = vmatpush2.msra.mxu0 0.0
          %952 = vmatprep.subr.mxu0 0.0
          %953 = vmatpush2.msra.mxu0 0.0
          %954 = vmatprep.subr.mxu0 0.0
          %955 = vmatpush2.msra.mxu0 0.0
          %956 = vmatprep.mubr.f32.mxu0 0.0
          %957 = vmatmul.mubr.f32.gmra.mxu0 %v836
          %v958 = vpop.f32.mrf.mxu0
          %v959 = vadd.f32 0.0, %v958
          %v960 = vpop.f32.mrf.mxu0
          %961 = vmatprep.mubr.f32.mxu0 0.0
          %962 = vmatmul.mubr.f32.gmra.mxu0 %v837
          %v963 = vpop.f32.mrf.mxu0
          %v964 = vadd.f32 0.0, %v963
          %v965 = vpop.f32.mrf.mxu0
          %966 = vmatprep.mubr.f32.mxu0 0.0
          %967 = vmatmul.mubr.f32.gmra.mxu0 %v838
          %v968 = vpop.f32.mrf.mxu0
          %v969 = vadd.f32 0.0, %v968
          %v970 = vpop.f32.mrf.mxu0
          %971 = vmatprep.mubr.f32.mxu0 0.0
          %972 = vmatmul.mubr.f32.gmra.mxu0 %v839
          %v973 = vpop.f32.mrf.mxu0
          %v974 = vadd.f32 0.0, %v973
          %v975 = vpop.f32.mrf.mxu0
          %976 = vmatprep.mubr.f32.mxu0 0.0
          %977 = vmatmul.mubr.f32.gmra.mxu0 %v840
          %v978 = vpop.f32.mrf.mxu0
          %v979 = vadd.f32 0.0, %v978
          %v980 = vpop.f32.mrf.mxu0
          %981 = vmatprep.mubr.f32.mxu0 0.0
          %982 = vmatmul.mubr.f32.gmra.mxu0 %v841
          %v983 = vpop.f32.mrf.mxu0
          %v984 = vadd.f32 0.0, %v983
          %v985 = vpop.f32.mrf.mxu0
          %986 = vmatprep.mubr.f32.mxu0 0.0
          %987 = vmatmul.mubr.f32.gmra.mxu0 %v842
          %v988 = vpop.f32.mrf.mxu0
          %v989 = vadd.f32 0.0, %v988
          %v990 = vpop.f32.mrf.mxu0
          %991 = vmatprep.mubr.f32.mxu0 0.0
          %992 = vmatmul.mubr.f32.gmra.mxu0 %v843
          %v993 = vpop.f32.mrf.mxu0
          %v994 = vadd.f32 0.0, %v993
          %v995 = vpop.f32.mrf.mxu0
          %996 = vmatprep.mubr.f32.mxu0 0.0
          %997 = vmatmul.mubr.f32.gmra.mxu0 %v844
          %v998 = vpop.f32.mrf.mxu0
          %v999 = vadd.f32 0.0, %v998
          %v1000 = vpop.f32.mrf.mxu0
          %1001 = vmatprep.mubr.f32.mxu0 0.0
          %1002 = vmatmul.mubr.f32.gmra.mxu0 %v845
          %v1003 = vpop.f32.mrf.mxu0
          %v1004 = vadd.f32 0.0, %v1003
          %v1005 = vpop.f32.mrf.mxu0
          %1006 = vmatprep.mubr.f32.mxu0 0.0
          %1007 = vmatmul.mubr.f32.gmra.mxu0 %v846
          %v1008 = vpop.f32.mrf.mxu0
          %v1009 = vadd.f32 0.0, %v1008
          %v1010 = vpop.f32.mrf.mxu0
          %1011 = vmatprep.mubr.f32.mxu0 0.0
          %1012 = vmatmul.mubr.f32.gmra.mxu0 %v847
          %v1013 = vpop.f32.mrf.mxu0
          %v1014 = vadd.f32 0.0, %v1013
          %v1015 = vpop.f32.mrf.mxu0
          %1016 = vmatprep.mubr.f32.mxu0 0.0
          %1017 = vmatmul.mubr.f32.gmra.mxu0 %v848
          %v1018 = vpop.f32.mrf.mxu0
          %v1019 = vadd.f32 0.0, %v1018
          %v1020 = vpop.f32.mrf.mxu0
          %1021 = vmatprep.mubr.f32.mxu0 0.0
          %1022 = vmatmul.mubr.f32.gmra.mxu0 %v849
          %v1023 = vpop.f32.mrf.mxu0
          %v1024 = vadd.f32 0.0, %v1023
          %v1025 = vpop.f32.mrf.mxu0
          %1026 = vmatprep.mubr.f32.mxu0 0.0
          %1027 = vmatmul.mubr.f32.gmra.mxu0 %v850
          %v1028 = vpop.f32.mrf.mxu0
          %v1029 = vadd.f32 0.0, %v1028
          %v1030 = vpop.f32.mrf.mxu0
          %1031 = vmatprep.mubr.f32.mxu0 0.0
          %1032 = vmatmul.mubr.f32.gmra.mxu0 %v851
          %v1033 = vpop.f32.mrf.mxu0
          %v1034 = vadd.f32 0.0, %v1033
          %v1035 = vpop.f32.mrf.mxu0
          %1036 = vdwg.mxu0
          %vm1037 = vcmask 523264
          %v1039 = vsel %vm1037, %v852, 0
          %v1042 = vsel %vm1037, %v853, 0
          %v1045 = vsel %vm1037, %v854, 0
          %v1048 = vsel %vm1037, %v855, 0
          %v1051 = vsel %vm1037, %v856, 0
          %v1054 = vsel %vm1037, %v857, 0
          %v1057 = vsel %vm1037, %v858, 0
          %v1060 = vsel %vm1037, %v859, 0
          %v1063 = vsel %vm1037, %v860, 0
          %v1066 = vsel %vm1037, %v861, 0
          %v1069 = vsel %vm1037, %v862, 0
          %v1072 = vsel %vm1037, %v863, 0
          %v1075 = vsel %vm1037, %v864, 0
          %v1078 = vsel %vm1037, %v865, 0
          %v1081 = vsel %vm1037, %v866, 0
          %v1084 = vsel %vm1037, %v867, 0
          %1086 = vmatprep.subr.mxu0 0.0
          %1087 = vmatpush1.msra.mxu0 0.0
          %1088 = vmatprep.subr.mxu0 0.0
          %1089 = vmatpush1.msra.mxu0 0.0
          %1090 = vmatprep.subr.mxu0 0.0
          %1091 = vmatpush1.msra.mxu0 0.0
          %1092 = vmatprep.subr.mxu0 0.0
          %1093 = vmatpush1.msra.mxu0 0.0
          %1094 = vmatprep.subr.mxu0 0.0
          %1095 = vmatpush1.msra.mxu0 0.0
          %1096 = vmatprep.subr.mxu0 0.0
          %1097 = vmatpush1.msra.mxu0 0.0
          %1098 = vmatprep.subr.mxu0 0.0
          %1099 = vmatpush1.msra.mxu0 0.0
          %1100 = vmatprep.subr.mxu0 0.0
          %1101 = vmatpush1.msra.mxu0 0.0
          %1102 = vmatprep.subr.mxu0 0.0
          %1103 = vmatpush1.msra.mxu0 %v875
          %1104 = vmatprep.subr.mxu0 0.0
          %1105 = vmatpush1.msra.mxu0 %v874
          %1106 = vmatprep.subr.mxu0 0.0
          %1107 = vmatpush1.msra.mxu0 %v873
          %1108 = vmatprep.subr.mxu0 0.0
          %1109 = vmatpush1.msra.mxu0 %v872
          %1110 = vmatprep.subr.mxu0 0.0
          %1111 = vmatpush1.msra.mxu0 %v871
          %1112 = vmatprep.subr.mxu0 0.0
          %1113 = vmatpush1.msra.mxu0 %v870
          %1114 = vmatprep.subr.mxu0 0.0
          %1115 = vmatpush1.msra.mxu0 %v869
          %1116 = vmatprep.subr.mxu0 0.0
          %1117 = vmatpush1.msra.mxu0 %v868
          %1118 = vmatprep.subr.mxu0 0.0
          %1119 = vmatpush2.msra.mxu0 0.0
          %1120 = vmatprep.subr.mxu0 0.0
          %1121 = vmatpush2.msra.mxu0 0.0
          %1122 = vmatprep.subr.mxu0 0.0
          %1123 = vmatpush2.msra.mxu0 0.0
          %1124 = vmatprep.subr.mxu0 0.0
          %1125 = vmatpush2.msra.mxu0 0.0
          %1126 = vmatprep.subr.mxu0 0.0
          %1127 = vmatpush2.msra.mxu0 0.0
          %1128 = vmatprep.subr.mxu0 0.0
          %1129 = vmatpush2.msra.mxu0 0.0
          %1130 = vmatprep.subr.mxu0 0.0
          %1131 = vmatpush2.msra.mxu0 0.0
          %1132 = vmatprep.subr.mxu0 0.0
          %1133 = vmatpush2.msra.mxu0 0.0
          %1134 = vmatprep.subr.mxu0 0.0
          %1135 = vmatpush2.msra.mxu0 0.0
          %1136 = vmatprep.subr.mxu0 0.0
          %1137 = vmatpush2.msra.mxu0 0.0
          %1138 = vmatprep.subr.mxu0 0.0
          %1139 = vmatpush2.msra.mxu0 0.0
          %1140 = vmatprep.subr.mxu0 0.0
          %1141 = vmatpush2.msra.mxu0 0.0
          %1142 = vmatprep.subr.mxu0 0.0
          %1143 = vmatpush2.msra.mxu0 0.0
          %1144 = vmatprep.subr.mxu0 0.0
          %1145 = vmatpush2.msra.mxu0 0.0
          %1146 = vmatprep.subr.mxu0 0.0
          %1147 = vmatpush2.msra.mxu0 0.0
          %1148 = vmatprep.subr.mxu0 0.0
          %1149 = vmatpush2.msra.mxu0 0.0
          %1150 = vmatprep.mubr.f32.mxu0 0.0
          %1151 = vmatmul.mubr.f32.gmra.mxu0 %v1039
          %v1152 = vpop.f32.mrf.mxu0
          %v1153 = vadd.f32 %v959, %v1152
          %v1154 = vpop.f32.mrf.mxu0
          %1155 = vmatprep.mubr.f32.mxu0 0.0
          %1156 = vmatmul.mubr.f32.gmra.mxu0 %v1042
          %v1157 = vpop.f32.mrf.mxu0
          %v1158 = vadd.f32 %v964, %v1157
          %v1159 = vpop.f32.mrf.mxu0
          %1160 = vmatprep.mubr.f32.mxu0 0.0
          %1161 = vmatmul.mubr.f32.gmra.mxu0 %v1045
          %v1162 = vpop.f32.mrf.mxu0
          %v1163 = vadd.f32 %v969, %v1162
          %v1164 = vpop.f32.mrf.mxu0
          %1165 = vmatprep.mubr.f32.mxu0 0.0
          %1166 = vmatmul.mubr.f32.gmra.mxu0 %v1048
          %v1167 = vpop.f32.mrf.mxu0
          %v1168 = vadd.f32 %v974, %v1167
          %v1169 = vpop.f32.mrf.mxu0
          %1170 = vmatprep.mubr.f32.mxu0 0.0
          %1171 = vmatmul.mubr.f32.gmra.mxu0 %v1051
          %v1172 = vpop.f32.mrf.mxu0
          %v1173 = vadd.f32 %v979, %v1172
          %v1174 = vpop.f32.mrf.mxu0
          %1175 = vmatprep.mubr.f32.mxu0 0.0
          %1176 = vmatmul.mubr.f32.gmra.mxu0 %v1054
          %v1177 = vpop.f32.mrf.mxu0
          %v1178 = vadd.f32 %v984, %v1177
          %v1179 = vpop.f32.mrf.mxu0
          %1180 = vmatprep.mubr.f32.mxu0 0.0
          %1181 = vmatmul.mubr.f32.gmra.mxu0 %v1057
          %v1182 = vpop.f32.mrf.mxu0
          %v1183 = vadd.f32 %v989, %v1182
          %v1184 = vpop.f32.mrf.mxu0
          %1185 = vmatprep.mubr.f32.mxu0 0.0
          %1186 = vmatmul.mubr.f32.gmra.mxu0 %v1060
          %v1187 = vpop.f32.mrf.mxu0
          %v1188 = vadd.f32 %v994, %v1187
          %v1189 = vpop.f32.mrf.mxu0
          %1190 = vmatprep.mubr.f32.mxu0 0.0
          %1191 = vmatmul.mubr.f32.gmra.mxu0 %v1063
          %v1192 = vpop.f32.mrf.mxu0
          %v1193 = vadd.f32 %v999, %v1192
          %v1194 = vpop.f32.mrf.mxu0
          %1195 = vmatprep.mubr.f32.mxu0 0.0
          %1196 = vmatmul.mubr.f32.gmra.mxu0 %v1066
          %v1197 = vpop.f32.mrf.mxu0
          %v1198 = vadd.f32 %v1004, %v1197
          %v1199 = vpop.f32.mrf.mxu0
          %1200 = vmatprep.mubr.f32.mxu0 0.0
          %1201 = vmatmul.mubr.f32.gmra.mxu0 %v1069
          %v1202 = vpop.f32.mrf.mxu0
          %v1203 = vadd.f32 %v1009, %v1202
          %v1204 = vpop.f32.mrf.mxu0
          %1205 = vmatprep.mubr.f32.mxu0 0.0
          %1206 = vmatmul.mubr.f32.gmra.mxu0 %v1072
          %v1207 = vpop.f32.mrf.mxu0
          %v1208 = vadd.f32 %v1014, %v1207
          %v1209 = vpop.f32.mrf.mxu0
          %1210 = vmatprep.mubr.f32.mxu0 0.0
          %1211 = vmatmul.mubr.f32.gmra.mxu0 %v1075
          %v1212 = vpop.f32.mrf.mxu0
          %v1213 = vadd.f32 %v1019, %v1212
          %v1214 = vpop.f32.mrf.mxu0
          %1215 = vmatprep.mubr.f32.mxu0 0.0
          %1216 = vmatmul.mubr.f32.gmra.mxu0 %v1078
          %v1217 = vpop.f32.mrf.mxu0
          %v1218 = vadd.f32 %v1024, %v1217
          %v1219 = vpop.f32.mrf.mxu0
          %1220 = vmatprep.mubr.f32.mxu0 0.0
          %1221 = vmatmul.mubr.f32.gmra.mxu0 %v1081
          %v1222 = vpop.f32.mrf.mxu0
          %v1223 = vadd.f32 %v1029, %v1222
          %v1224 = vpop.f32.mrf.mxu0
          %1225 = vmatprep.mubr.f32.mxu0 0.0
          %1226 = vmatmul.mubr.f32.gmra.mxu0 %v1084
          %v1227 = vpop.f32.mrf.mxu0
          %v1228 = vadd.f32 %v1034, %v1227
          %v1229 = vpop.f32.mrf.mxu0
          %1230 = vdwg.mxu0
          %1231 = vst [vmem:[%s305] sm:$0xff] %v1153
          %1232 = vst [vmem:[%s305 + $0x8] sm:$0xff] %v1158
          %1233 = vst [vmem:[%s305 + $0x10] sm:$0xff] %v1163
          %1234 = vst [vmem:[%s305 + $0x18] sm:$0xff] %v1168
          %1235 = vst [vmem:[%s305 + $0x20] sm:$0xff] %v1173
          %1236 = vst [vmem:[%s305 + $0x28] sm:$0xff] %v1178
          %1237 = vst [vmem:[%s305 + $0x30] sm:$0xff] %v1183
          %1238 = vst [vmem:[%s305 + $0x38] sm:$0xff] %v1188
          %1239 = vst [vmem:[%s305 + $0x40] sm:$0xff] %v1193
          %1240 = vst [vmem:[%s305 + $0x48] sm:$0xff] %v1198
          %1241 = vst [vmem:[%s305 + $0x50] sm:$0xff] %v1203
          %1242 = vst [vmem:[%s305 + $0x58] sm:$0xff] %v1208
          %1243 = vst [vmem:[%s305 + $0x60] sm:$0xff] %v1213
          %1244 = vst [vmem:[%s305 + $0x68] sm:$0xff] %v1218
          %1245 = vst [vmem:[%s305 + $0x70] sm:$0xff] %v1223
          %1246 = vst [vmem:[%s305 + $0x78] sm:$0xff] %v1228
        $region56: #{tpu_custom_call.1} parent=39 // pred_fallthru
          _
        %s1247 = sand.u32 %s163, 1
        %s1248 = scalar_lea.sflag [#allocation5], %s1247
        %s1249 = sand.u32 %s163, 1
        %s1250 = smul.addr %s1249, 128
        %s1251 = scalar_lea.vmem [#allocation8], %s1250
        // Predicated region
        $region57: #{tpu_custom_call.1} parent=39 // pred_check
          %p1252 = pneg %p173
        $region58: #{tpu_custom_call.1} parent=39 // pred_check_branch
          %1254 = sbr.rel (%p1252) target = $region60
        $region59: #{tpu_custom_call.1} parent=39 // pred_region
          %s1255 = smul.u32 16, %s25
          %s1257 = ssub.s32 2048, 2048
          %1258 = vsyncadd %s1248, %s1257
          %s1259 = smul.addr %s1255, 128
          %s1260 = scalar_lea.hbm %s5, %s1259
          %s1261 = sshll.u32 %s1251, 4
          %s1262 = int_to_ptr.vmem [resolvable:$true] %s1261
          %1267 = dma.vmem_to_hbm [thread:$0]  %s1262, 2048, %s1260, %s1248, 128, 128, 8
        $region60: #{tpu_custom_call.1} parent=39 // pred_fallthru
          _
      $region40: #{tpu_custom_call.1} parent=5 // pred_fallthru
        _
      %p1268 = scmp.le.s32.totalorder 2, %s16
      // Predicated region
      $region61: #{tpu_custom_call.1} parent=5 // pred_check
        %p1269 = pneg %p1268
      $region62: #{tpu_custom_call.1} parent=5 // pred_check_branch
        %1271 = sbr.rel (%p1269) target = $region64
      $region63: #{tpu_custom_call.1} parent=5 // pred_region
        %s1272 = ssub.s32 %s16, 2
        // Predicated region
        $region65: #{tpu_custom_call.1} parent=63 // pred_check
          %p1273 = pneg %p179
        $region66: #{tpu_custom_call.1} parent=63 // pred_check_branch
          %1275 = sbr.rel (%p1273) target = $region68
        $region67: #{tpu_custom_call.1} parent=63 // pred_region
          %s1276 = sand.u32 %s164, 1
          %s1277 = scalar_lea.sflag [#allocation5], %s1276
          %s1278 = sand.u32 %s164, 1
          %s1279 = smul.addr %s1278, 128
          %s1280 = scalar_lea.vmem [#allocation8], %s1279
          %1281 = dma.done %s1277, 2048
        $region68: #{tpu_custom_call.1} parent=63 // pred_fallthru
          _
      $region64: #{tpu_custom_call.1} parent=5 // pred_fallthru
        _
    $region6: #{tpu_custom_call.1} parent=1 // loop_footer
      %s20 = sadd.s32 1, %s16
    $region7: #{tpu_custom_call.1} parent=1 // loop_footer_branch
      %15 = sbr.rel target = $region3
    $region8: #{tpu_custom_call.1} parent=1 // loop_exit
      _
    %1282 = vsyncpa [#allocation4], 1
    %s1283 = scalar_lea.sflag [#allocation4], 1
    %1284 = vsyncpa %s1283, 1
    %1285 = vsyncpa [#allocation7], 1
    %1286 = vsyncpa [#allocation5], 1
    %s1287 = scalar_lea.sflag [#allocation5], 1
    %1288 = vsyncpa %s1287, 1

</llo_original>
